<compile_context>
chip_gen: v5e
topology: v5e:2x2
jax: 0.10.0
libtpu: 0.0.40
codegen_flags: <defaults>
</compile_context>

<pallas_src>
import functools
import math

import jax
import jax.numpy as jnp
from jax.experimental import pallas as pl
from jax.experimental.pallas import tpu as pltpu


def _softplus(v, eup_dtype=jnp.float32):
    # Numerically stable softplus, identical to log(exp(v)+1):
    #   max(v, 0) + log1p(exp(-|v|))
    # The transcendentals (exp, log1p) may run in bf16 on v6e/v7x; the
    # surrounding max/add stay in f32.
    t = jnp.exp((-jnp.abs(v)).astype(eup_dtype))
    return jnp.maximum(v, 0.0) + jnp.log1p(t).astype(jnp.float32)


def hsep_kernel(x_ref, w1_ref, b1_ref, w2_ref, b2_ref, w3_ref, b3_ref,
                out_ref, *, eup_dtype):
    cdt = x_ref.dtype  # streamed/compute dtype (f32 or bf16)
    # Layer 1 (both branches at once via block-diagonal W1).
    z = jnp.dot(x_ref[...], w1_ref[...],
                preferred_element_type=jnp.float32) + b1_ref[...]
    h = _softplus(z, eup_dtype).astype(cdt)
    # Layer 2.
    z = jnp.dot(h, w2_ref[...],
                preferred_element_type=jnp.float32) + b2_ref[...]
    h = _softplus(z, eup_dtype).astype(cdt)
    # Layer 3: [ha, hb] @ [w1c; w2c] == ha@w1c + hb@w2c -> final add is free.
    out_ref[...] = (jnp.dot(h, w3_ref[...],
                            preferred_element_type=jnp.float32)
                    + b3_ref[...]).astype(out_ref.dtype)


def _block_diag(a, b):
    ra, ca = a.shape
    rb, cb = b.shape
    top = jnp.concatenate([a, jnp.zeros((ra, cb), a.dtype)], axis=1)
    bot = jnp.concatenate([jnp.zeros((rb, ca), b.dtype), b], axis=1)
    return jnp.concatenate([top, bot], axis=0)


def _fuse_params(p):
    """Fuse the two branches into block-diagonal / stacked weights."""
    w1 = _block_diag(p["w1a"], p["w2a"])                    # (2*in, 2*h1)
    b1 = jnp.concatenate([p["b1a"], p["b2a"]], axis=1)      # (1, 2*h1)
    w2 = _block_diag(p["w1b"], p["w2b"])                    # (2*h1, 2*h2)
    b2 = jnp.concatenate([p["b1b"], p["b2b"]], axis=1)      # (1, 2*h2)
    w3 = jnp.concatenate([p["w1c"], p["w2c"]], axis=0)      # (2*h2, out)
    b3 = p["b1c"] + p["b2c"]                                # (1, out)
    return w1, b1, w2, b2, w3, b3


def _round_up(v, m):
    return ((v + m - 1) // m) * m


def hsepnet_forward(x, params, *, batch_tile=4096,
                    compute_dtype=jnp.float32, transcendental_dtype=None):
    """x: (N, 2*input_size) float32; params: dict of per-branch weights.

    compute_dtype: dtype of the streamed x / resident weights at the MXU
      inputs (f32 for exact results, bf16 for the fast path on v5e/v6e/v7x).
    transcendental_dtype: dtype fed to exp/log1p inside softplus. Defaults to
      compute_dtype; on v5e pass jnp.float32 (no bf16 EUP there).
    """
    n, d = x.shape
    w1, b1, w2, b2, w3, b3 = _fuse_params(params)
    out_size = w3.shape[1]

    cdt = jnp.dtype(compute_dtype)
    eup_dtype = jnp.dtype(
        transcendental_dtype if transcendental_dtype is not None else cdt)

    # Cast only the streamed/MXU-input arrays; biases stay f32 (added to the
    # f32 accumulator), output stays f32 (module contract, tiny writeback).
    x = x.astype(cdt)
    w1, w2, w3 = (w.astype(cdt) for w in (w1, w2, w3))

    # Batch tile: large to amortize per-grid-step overhead, multiple of 8,
    # capped at ~N/2 so the 1-D grid has >=2 steps for v7x's two TensorCores.
    tb = max(8, min(batch_tile, _round_up(pl.cdiv(n, 2), 8)))

    # Pad N only to a sublane multiple; ragged last tile handled by Pallas.
    n_pad = _round_up(n, 8)
    if n_pad != n:
        x = jnp.pad(x, ((0, n_pad - n), (0, 0)))
    grid = (pl.cdiv(n_pad, tb),)

    def resident(shape):
        # Same block every grid step -> stays resident in VMEM.
        return pl.BlockSpec(shape, lambda i: (0, 0))

    kernel = functools.partial(hsep_kernel, eup_dtype=eup_dtype)

    out = pl.pallas_call(
        kernel,
        out_shape=jax.ShapeDtypeStruct((n_pad, out_size), jnp.float32),
        grid=grid,
        in_specs=[
            pl.BlockSpec((tb, d), lambda i: (i, 0)),   # x: tiled over batch
            resident(w1.shape), resident(b1.shape),
            resident(w2.shape), resident(b2.shape),
            resident(w3.shape), resident(b3.shape),
        ],
        # Output kept at its natural (lane-sparse) width: padding to 128 lanes
        # would inflate HBM writeback ~16x for no benefit.
        out_specs=pl.BlockSpec((tb, out_size), lambda i: (i, 0)),
        compiler_params=pltpu.CompilerParams(
            dimension_semantics=("parallel",),          # megacore split on v7x
            vmem_limit_bytes=32 * 1024 * 1024,          # footprint << cap
        ),
    )(x, w1, b1, w2, b2, w3, b3)

    if n_pad != n:
        out = out[:n]
    return out


def init_params(key, input_size, hidden1, hidden2, output_size):
    """Deterministic kaiming-uniform-ish init matching newLinear shapes."""
    def linear(key, fan_in, fan_out):
        kw, kb = jax.random.split(key)
        bound_w = math.sqrt(6.0 / ((1.0 + 5.0) * fan_in))
        w = jax.random.uniform(kw, (fan_in, fan_out), jnp.float32,
                               -bound_w, bound_w)
        bound_b = 1.0 / math.sqrt(fan_in)
        b = jax.random.uniform(kb, (1, fan_out), jnp.float32,
                               -bound_b, bound_b)
        return w, b

    keys = jax.random.split(key, 6)
    p = {}
    p["w1a"], p["b1a"] = linear(keys[0], input_size, hidden1)
    p["w1b"], p["b1b"] = linear(keys[1], hidden1, hidden2)
    p["w1c"], p["b1c"] = linear(keys[2], hidden2, output_size)
    p["w2a"], p["b2a"] = linear(keys[3], input_size, hidden1)
    p["w2b"], p["b2b"] = linear(keys[4], hidden1, hidden2)
    p["w2c"], p["b2c"] = linear(keys[5], hidden2, output_size)
    return p


def hsepnet_reference(x, p):
    """Pure-JAX reference mirroring the PyTorch forward (per-branch)."""
    half = x.shape[-1] // 2
    xa, xb = x[:, :half], x[:, half:]
    sp = _softplus
    xa = sp(xa @ p["w1a"] + p["b1a"])
    xb = sp(xb @ p["w2a"] + p["b2a"])
    xa = sp(xa @ p["w1b"] + p["b1b"])
    xb = sp(xb @ p["w2b"] + p["b2b"])
    xa = xa @ p["w1c"] + p["b1c"]
    xb = xb @ p["w2c"] + p["b2c"]
    return xa + xb


if __name__ == "__main__":
    key = jax.random.PRNGKey(0)
    k_x, k_p, k_x2 = jax.random.split(key, 3)

    # Small shapes consistent with the module: each half has input_size feats.
    batch = 8
    input_size = 16     # per-branch input (x has 2*input_size features)
    hidden1 = 32
    hidden2 = 32
    output_size = 8

    x = jax.random.normal(k_x, (batch, 2 * input_size), jnp.float32)
    params = init_params(k_p, input_size, hidden1, hidden2, output_size)

    # 1) f32 path: exact match against the pure-JAX reference.
    out = jax.block_until_ready(hsepnet_forward(x, params))
    ref = hsepnet_reference(x, params)
    assert out.shape == (batch, output_size)
    assert jnp.allclose(out, ref, atol=1e-5, rtol=1e-5), "f32 mismatch"

    # 2) Multi-step grid with a ragged last tile (N not a multiple of tb).
    x2 = jax.random.normal(k_x2, (1000, 2 * input_size), jnp.float32)
    ref2 = hsepnet_reference(x2, params)
    out2 = jax.block_until_ready(hsepnet_forward(x2, params, batch_tile=256))
    assert out2.shape == ref2.shape
    assert jnp.allclose(out2, ref2, atol=1e-5, rtol=1e-5), "ragged f32 mismatch"

    # 3) bf16 fast path (v6e/v7x flavour: bf16 MXU inputs + bf16 EUP softplus,
    #    f32 accumulation). Looser tolerance by construction.
    out_bf = jax.block_until_ready(
        hsepnet_forward(x2, params, compute_dtype=jnp.bfloat16))
    assert jnp.allclose(out_bf, ref2, atol=2e-1, rtol=1e-1), "bf16 mismatch"

    print("KERNEL_OK")
</pallas_src>

<mosaic_0001>
module attributes {stable_mosaic.version = 11 : i64} {
  func.func @hsep_kernel(%arg0: i32, %arg1: memref<8x32xf32, #tpu.memory_space<vmem>>, %arg2: memref<32x64xf32, #tpu.memory_space<vmem>>, %arg3: memref<1x64xf32, #tpu.memory_space<vmem>>, %arg4: memref<64x64xf32, #tpu.memory_space<vmem>>, %arg5: memref<1x64xf32, #tpu.memory_space<vmem>>, %arg6: memref<64x8xf32, #tpu.memory_space<vmem>>, %arg7: memref<1x8xf32, #tpu.memory_space<vmem>>, %arg8: memref<8x8xf32, #tpu.memory_space<vmem>>) attributes {dimension_semantics = [#tpu.dimension_semantics<parallel>], iteration_bounds = array<i64: 1>, scalar_prefetch = 0 : i64, scratch_operands = 0 : i64, tpu.core_type = #tpu.core_type<tc>, window_params = [{transform_indices = @transform_0, window_bounds = array<i64: 8, 32>}, {pipeline_mode = #tpu.pipeline_mode<synchronous>, transform_indices = @transform_1, window_bounds = array<i64: 32, 64>}, {pipeline_mode = #tpu.pipeline_mode<synchronous>, transform_indices = @transform_2, window_bounds = array<i64: 1, 64>}, {pipeline_mode = #tpu.pipeline_mode<synchronous>, transform_indices = @transform_3, window_bounds = array<i64: 64, 64>}, {pipeline_mode = #tpu.pipeline_mode<synchronous>, transform_indices = @transform_4, window_bounds = array<i64: 1, 64>}, {pipeline_mode = #tpu.pipeline_mode<synchronous>, transform_indices = @transform_5, window_bounds = array<i64: 64, 8>}, {pipeline_mode = #tpu.pipeline_mode<synchronous>, transform_indices = @transform_6, window_bounds = array<i64: 1, 8>}, {transform_indices = @transform_7, window_bounds = array<i64: 8, 8>}]} {
    %c0 = arith.constant 0 : index
    %c0_0 = arith.constant 0 : index
    %0 = vector.load %arg1[%c0, %c0_0] : memref<8x32xf32, #tpu.memory_space<vmem>>, vector<8x32xf32>
    %c0_1 = arith.constant 0 : index
    %c0_2 = arith.constant 0 : index
    %1 = vector.load %arg2[%c0_1, %c0_2] : memref<32x64xf32, #tpu.memory_space<vmem>>, vector<32x64xf32>
    %cst = arith.constant dense<0.000000e+00> : vector<8x64xf32>
    %2 = tpu.matmul %0, %1, %cst {dimension_numbers = #tpu.dot_dimension_numbers<[1], [0], [0], [1], [0, 0, 1, 1], [], []>} : vector<8x32xf32>, vector<32x64xf32>, vector<8x64xf32> -> vector<8x64xf32>
    %c0_3 = arith.constant 0 : index
    %c0_4 = arith.constant 0 : index
    %3 = vector.load %arg3[%c0_3, %c0_4] : memref<1x64xf32, #tpu.memory_space<vmem>>, vector<1x64xf32>
    %4 = vector.broadcast %3 : vector<1x64xf32> to vector<8x64xf32>
    %5 = arith.addf %2, %4 : vector<8x64xf32>
    %6 = math.absf %5 : vector<8x64xf32>
    %cst_5 = arith.constant 0.000000e+00 : f32
    %7 = vector.broadcast %cst_5 : f32 to vector<8x64xf32>
    %8 = arith.subf %7, %6 : vector<8x64xf32>
    %9 = math.exp %8 : vector<8x64xf32>
    %cst_6 = arith.constant 0.000000e+00 : f32
    %10 = vector.broadcast %cst_6 : f32 to vector<8x64xf32>
    %11 = arith.maximumf %5, %10 : vector<8x64xf32>
    %12 = math.log1p %9 : vector<8x64xf32>
    %13 = arith.addf %11, %12 : vector<8x64xf32>
    %c0_7 = arith.constant 0 : index
    %c0_8 = arith.constant 0 : index
    %14 = vector.load %arg4[%c0_7, %c0_8] : memref<64x64xf32, #tpu.memory_space<vmem>>, vector<64x64xf32>
    %cst_9 = arith.constant dense<0.000000e+00> : vector<8x64xf32>
    %15 = tpu.matmul %13, %14, %cst_9 {dimension_numbers = #tpu.dot_dimension_numbers<[1], [0], [0], [1], [0, 0, 1, 1], [], []>} : vector<8x64xf32>, vector<64x64xf32>, vector<8x64xf32> -> vector<8x64xf32>
    %c0_10 = arith.constant 0 : index
    %c0_11 = arith.constant 0 : index
    %16 = vector.load %arg5[%c0_10, %c0_11] : memref<1x64xf32, #tpu.memory_space<vmem>>, vector<1x64xf32>
    %17 = vector.broadcast %16 : vector<1x64xf32> to vector<8x64xf32>
    %18 = arith.addf %15, %17 : vector<8x64xf32>
    %19 = math.absf %18 : vector<8x64xf32>
    %cst_12 = arith.constant 0.000000e+00 : f32
    %20 = vector.broadcast %cst_12 : f32 to vector<8x64xf32>
    %21 = arith.subf %20, %19 : vector<8x64xf32>
    %22 = math.exp %21 : vector<8x64xf32>
    %cst_13 = arith.constant 0.000000e+00 : f32
    %23 = vector.broadcast %cst_13 : f32 to vector<8x64xf32>
    %24 = arith.maximumf %18, %23 : vector<8x64xf32>
    %25 = math.log1p %22 : vector<8x64xf32>
    %26 = arith.addf %24, %25 : vector<8x64xf32>
    %c0_14 = arith.constant 0 : index
    %c0_15 = arith.constant 0 : index
    %27 = vector.load %arg6[%c0_14, %c0_15] : memref<64x8xf32, #tpu.memory_space<vmem>>, vector<64x8xf32>
    %cst_16 = arith.constant dense<0.000000e+00> : vector<8x8xf32>
    %28 = tpu.matmul %26, %27, %cst_16 {dimension_numbers = #tpu.dot_dimension_numbers<[1], [0], [0], [1], [0, 0, 1, 1], [], []>} : vector<8x64xf32>, vector<64x8xf32>, vector<8x8xf32> -> vector<8x8xf32>
    %c0_17 = arith.constant 0 : index
    %c0_18 = arith.constant 0 : index
    %29 = vector.load %arg7[%c0_17, %c0_18] : memref<1x8xf32, #tpu.memory_space<vmem>>, vector<1x8xf32>
    %30 = vector.broadcast %29 : vector<1x8xf32> to vector<8x8xf32>
    %31 = arith.addf %28, %30 : vector<8x8xf32>
    %c0_19 = arith.constant 0 : index
    %c0_20 = arith.constant 0 : index
    %32 = vector.load %arg8[%c0_19, %c0_20] : memref<8x8xf32, #tpu.memory_space<vmem>>, vector<8x8xf32>
    tpu.vector_store %arg8[%c0_19, %c0_20], %31 {strides = array<i32>} : memref<8x8xf32, #tpu.memory_space<vmem>>, vector<8x8xf32>,
    return
  }
  func.func @transform_0(%arg0: i32) -> (i32, i32) {
    %c0_i32 = arith.constant 0 : i32
    %c0_i32_0 = arith.constant 0 : i32
    return %arg0, %c0_i32 : i32, i32
  }
  func.func @transform_1(%arg0: i32) -> (i32, i32) {
    %c0_i32 = arith.constant 0 : i32
    %c0_i32_0 = arith.constant 0 : i32
    %c0_i32_1 = arith.constant 0 : i32
    return %c0_i32, %c0_i32_0 : i32, i32
  }
  func.func @transform_2(%arg0: i32) -> (i32, i32) {
    %c0_i32 = arith.constant 0 : i32
    %c0_i32_0 = arith.constant 0 : i32
    %c0_i32_1 = arith.constant 0 : i32
    return %c0_i32, %c0_i32_0 : i32, i32
  }
  func.func @transform_3(%arg0: i32) -> (i32, i32) {
    %c0_i32 = arith.constant 0 : i32
    %c0_i32_0 = arith.constant 0 : i32
    %c0_i32_1 = arith.constant 0 : i32
    return %c0_i32, %c0_i32_0 : i32, i32
  }
  func.func @transform_4(%arg0: i32) -> (i32, i32) {
    %c0_i32 = arith.constant 0 : i32
    %c0_i32_0 = arith.constant 0 : i32
    %c0_i32_1 = arith.constant 0 : i32
    return %c0_i32, %c0_i32_0 : i32, i32
  }
  func.func @transform_5(%arg0: i32) -> (i32, i32) {
    %c0_i32 = arith.constant 0 : i32
    %c0_i32_0 = arith.constant 0 : i32
    %c0_i32_1 = arith.constant 0 : i32
    return %c0_i32, %c0_i32_0 : i32, i32
  }
  func.func @transform_6(%arg0: i32) -> (i32, i32) {
    %c0_i32 = arith.constant 0 : i32
    %c0_i32_0 = arith.constant 0 : i32
    %c0_i32_1 = arith.constant 0 : i32
    return %c0_i32, %c0_i32_0 : i32, i32
  }
  func.func @transform_7(%arg0: i32) -> (i32, i32) {
    %c0_i32 = arith.constant 0 : i32
    %c0_i32_0 = arith.constant 0 : i32
    return %arg0, %c0_i32 : i32, i32
  }
}

</mosaic_0001>

<llo_original>
// kernel: tpu_custom_call.1
$region0: #{tpu_custom_call.1}
  #allocation0 [shape = 'u32[]', space=smem, size = 0x4, offset = 0x4, fixed_abs, tag = 'smem constant byte address 0x4 - core index']
  #allocation1 [shape = 'u32[72,128]{1,0:T(1,128)}', space=vmem, size = 0x9000, scoped, tag = 'internal scratch']
  %s0 = inlined_call_operand.vmem [shape: f32[8,32], index: 0, kind: input, shape index: {}]
  %s1 = inlined_call_operand.hbm [shape: f32[32,64], index: 1, kind: input, shape index: {}]
  %s2 = inlined_call_operand.vmem [shape: f32[1,64], index: 2, kind: input, shape index: {}]
  %s3 = inlined_call_operand.vmem [shape: f32[64,64], index: 3, kind: input, shape index: {}]
  %s4 = inlined_call_operand.vmem [shape: f32[1,64], index: 4, kind: input, shape index: {}]
  %s5 = inlined_call_operand.vmem [shape: f32[64,8], index: 5, kind: input, shape index: {}]
  %s6 = inlined_call_operand.vmem [shape: f32[1,8], index: 6, kind: input, shape index: {}]
  %s7 = inlined_call_operand.hbm [shape: f32[8,8], index: 7, kind: output, shape index: {}]
  %s8 = sld [smem:[#allocation0]]
  $region42: #{tpu_custom_call.1} parent=0
    _
  %s10 = ssub.s32 1, %s8
  %s11 = scalar_select 0, %s10, %s8
  $region1: #{tpu_custom_call.1} parent=0
    #allocation2 [shape = 'u8[16384]{0}', space=vmem, size = 0x4000, scoped, tag = 'input window, operand 1, single buffered']
    #allocation3 [shape = 's32[1]{0}', space=sflag, size = 0x4, scoped, tag = 'scoped memory for tpu_custom_call.1']
    #allocation4 [shape = 's32[1]{0}', space=sflag, size = 0x4, scoped, tag = 'scoped memory for tpu_custom_call.1']
    #allocation5 [shape = 'u8[4096]{0}', space=vmem, size = 0x1000, scoped, tag = 'output window, operand 0, single buffered']
    %12 = vsyncpa [#allocation3], 0
    %13 = vsyncpa [#allocation4], 0
    // Predicated region
    $region2: #{tpu_custom_call.1} parent=1 // pred_check
      _
    $region3: #{tpu_custom_call.1} parent=1 // pred_check_branch
      %15 = sbr.rel (0) target = $region5
    $region4: #{tpu_custom_call.1} parent=1 // pred_region
      _
    $region5: #{tpu_custom_call.1} parent=1 // pred_fallthru
      _
    // Predicated region
    $region6: #{tpu_custom_call.1} parent=1 // pred_check
      _
    $region7: #{tpu_custom_call.1} parent=1 // pred_check_branch
      %17 = sbr.rel (0) target = $region9
    $region8: #{tpu_custom_call.1} parent=1 // pred_region
      %19 = vsyncadd [#allocation3], 0
      %s20 = sshll.u32 %s1, 4
      %s21 = int_to_ptr.hbm [resolvable:$true] %s20
      %s22 = sshll.u32 [#allocation2], 4
      %s23 = int_to_ptr.vmem [resolvable:$true] %s22
      %28 = dma.hbm_to_vmem [thread:$0]  %s21, 512, %s23, [#allocation3], 128, 128, 8
    $region9: #{tpu_custom_call.1} parent=1 // pred_fallthru
      _
    // Predicated region
    $region10: #{tpu_custom_call.1} parent=1 // pred_check
      _
    $region11: #{tpu_custom_call.1} parent=1 // pred_check_branch
      %30 = sbr.rel (0) target = $region13
    $region12: #{tpu_custom_call.1} parent=1 // pred_region
      _
    $region13: #{tpu_custom_call.1} parent=1 // pred_fallthru
      _
    // Predicated region
    $region14: #{tpu_custom_call.1} parent=1 // pred_check
      _
    $region15: #{tpu_custom_call.1} parent=1 // pred_check_branch
      %32 = sbr.rel (0) target = $region17
    $region16: #{tpu_custom_call.1} parent=1 // pred_region
      _
    $region17: #{tpu_custom_call.1} parent=1 // pred_fallthru
      _
    // Predicated region
    $region18: #{tpu_custom_call.1} parent=1 // pred_check
      _
    $region19: #{tpu_custom_call.1} parent=1 // pred_check_branch
      %34 = sbr.rel (0) target = $region21
    $region20: #{tpu_custom_call.1} parent=1 // pred_region
      _
    $region21: #{tpu_custom_call.1} parent=1 // pred_fallthru
      _
    // Predicated region
    $region22: #{tpu_custom_call.1} parent=1 // pred_check
      _
    $region23: #{tpu_custom_call.1} parent=1 // pred_check_branch
      %36 = sbr.rel (0) target = $region25
    $region24: #{tpu_custom_call.1} parent=1 // pred_region
      _
    $region25: #{tpu_custom_call.1} parent=1 // pred_fallthru
      _
    // Predicated region
    $region26: #{tpu_custom_call.1} parent=1 // pred_check
      _
    $region27: #{tpu_custom_call.1} parent=1 // pred_check_branch
      %38 = sbr.rel (0) target = $region29
    $region28: #{tpu_custom_call.1} parent=1 // pred_region
      _
    $region29: #{tpu_custom_call.1} parent=1 // pred_fallthru
      _
    // Predicated region
    $region30: #{tpu_custom_call.1} parent=1 // pred_check
      _
    $region31: #{tpu_custom_call.1} parent=1 // pred_check_branch
      %40 = sbr.rel (0) target = $region33
    $region32: #{tpu_custom_call.1} parent=1 // pred_region
      %42 = dma.done [#allocation3], 512
    $region33: #{tpu_custom_call.1} parent=1 // pred_fallthru
      _
    %v43 = vld [vmem:[%s0] sm:$0xff]
    %v44 = vld [vmem:[#allocation2] sm:$0xff]
    %v45 = vld [vmem:[#allocation2 + $0x8] sm:$0xff]
    %v46 = vld [vmem:[#allocation2 + $0x10] sm:$0xff]
    %v47 = vld [vmem:[#allocation2 + $0x18] sm:$0xff]
    %v48 = vld [vmem:[%s2] sm:$0x1]
    %v50 = vperm.slane %v48, 0
    %vm52 = vcmask 261120
    %v54 = vsel %vm52, %v43, 0
    %56 = vmatpush.msra.mxu0 0.0
    %57 = vmatpush.msra.mxu0 0.0
    %58 = vmatpush.msra.mxu0 0.0
    %59 = vmatpush.msra.mxu0 0.0
    %60 = vmatpush.msra.mxu0 0.0
    %61 = vmatpush.msra.mxu0 0.0
    %62 = vmatpush.msra.mxu0 0.0
    %63 = vmatpush.msra.mxu0 0.0
    %64 = vmatpush.msra.mxu0 0.0
    %65 = vmatpush.msra.mxu0 0.0
    %66 = vmatpush.msra.mxu0 0.0
    %67 = vmatpush.msra.mxu0 0.0
    %68 = vmatpush.msra.mxu0 %v47
    %69 = vmatpush.msra.mxu0 %v46
    %70 = vmatpush.msra.mxu0 %v45
    %71 = vmatpush.msra.mxu0 %v44
    %72 = vmatmul.f32.gmra.mxu0 %v54
    %v73 = vpop.f32.mrf.mxu0
    %v74 = vadd.f32 %v50, %v73
    %75 = vdwg.mxu0
    %v76 = vand.u32 2147483647, %v74
    %v77 = vsub.f32 0.0, %v76
    %v78 = vmul.f32 %v77, 1.442695
    %v79 = vpow.pop %v78
    %v80 = vmax.f32 %v74, 0.0
    %v81 = vadd.f32 %v79, 1.0
    %v82 = vlog2.pop %v81
    %v83 = vmul.f32 %v82, 0.6931472
    %v84 = vmul.f32 -0.5, %v79
    %v85 = vadd.f32 %v84, 1.0
    %v86 = vmul.f32 %v85, %v79
    %v87 = vand.u32 2147483647, %v79
    %vm88 = vcmp.lt.f32.partialorder %v87, 0.0004427343
    %v89 = vsel %vm88, %v86, %v83
    %v90 = vadd.f32 %v80, %v89
    %v91 = vld [vmem:[%s3] sm:$0xff]
    %v92 = vld [vmem:[%s3 + $0x8] sm:$0xff]
    %v93 = vld [vmem:[%s3 + $0x10] sm:$0xff]
    %v94 = vld [vmem:[%s3 + $0x18] sm:$0xff]
    %v95 = vld [vmem:[%s3 + $0x20] sm:$0xff]
    %v96 = vld [vmem:[%s3 + $0x28] sm:$0xff]
    %v97 = vld [vmem:[%s3 + $0x30] sm:$0xff]
    %v98 = vld [vmem:[%s3 + $0x38] sm:$0xff]
    %v99 = vld [vmem:[%s4] sm:$0x1]
    %v101 = vperm.slane %v99, 0
    %vm103 = vcmask 523264
    %v105 = vsel %vm103, %v90, 0
    %107 = vmatpush.msra.mxu0 0.0
    %108 = vmatpush.msra.mxu0 0.0
    %109 = vmatpush.msra.mxu0 0.0
    %110 = vmatpush.msra.mxu0 0.0
    %111 = vmatpush.msra.mxu0 0.0
    %112 = vmatpush.msra.mxu0 0.0
    %113 = vmatpush.msra.mxu0 0.0
    %114 = vmatpush.msra.mxu0 0.0
    %115 = vmatpush.msra.mxu0 %v98
    %116 = vmatpush.msra.mxu0 %v97
    %117 = vmatpush.msra.mxu0 %v96
    %118 = vmatpush.msra.mxu0 %v95
    %119 = vmatpush.msra.mxu0 %v94
    %120 = vmatpush.msra.mxu0 %v93
    %121 = vmatpush.msra.mxu0 %v92
    %122 = vmatpush.msra.mxu0 %v91
    %123 = vmatmul.f32.gmra.mxu0 %v105
    %v124 = vpop.f32.mrf.mxu0
    %v125 = vadd.f32 %v101, %v124
    %126 = vdwg.mxu0
    %v127 = vand.u32 2147483647, %v125
    %v128 = vsub.f32 0.0, %v127
    %v129 = vmul.f32 %v128, 1.442695
    %v130 = vpow.pop %v129
    %v131 = vmax.f32 %v125, 0.0
    %v132 = vadd.f32 %v130, 1.0
    %v133 = vlog2.pop %v132
    %v134 = vmul.f32 %v133, 0.6931472
    %v135 = vmul.f32 -0.5, %v130
    %v136 = vadd.f32 %v135, 1.0
    %v137 = vmul.f32 %v136, %v130
    %v138 = vand.u32 2147483647, %v130
    %vm139 = vcmp.lt.f32.partialorder %v138, 0.0004427343
    %v140 = vsel %vm139, %v137, %v134
    %v141 = vadd.f32 %v131, %v140
    %v142 = vld [vmem:[%s5] sm:$0xff]
    %v143 = vld [vmem:[%s5 + $0x8] sm:$0xff]
    %v144 = vld [vmem:[%s5 + $0x10] sm:$0xff]
    %v145 = vld [vmem:[%s5 + $0x18] sm:$0xff]
    %v146 = vld [vmem:[%s5 + $0x20] sm:$0xff]
    %v147 = vld [vmem:[%s5 + $0x28] sm:$0xff]
    %v148 = vld [vmem:[%s5 + $0x30] sm:$0xff]
    %v149 = vld [vmem:[%s5 + $0x38] sm:$0xff]
    %v150 = vld [vmem:[%s6] sm:$0x1]
    %v152 = vperm.slane %v150, 0
    %v155 = vsel %vm103, %v141, 0
    %157 = vmatpush.msra.mxu0 0.0
    %158 = vmatpush.msra.mxu0 0.0
    %159 = vmatpush.msra.mxu0 0.0
    %160 = vmatpush.msra.mxu0 0.0
    %161 = vmatpush.msra.mxu0 0.0
    %162 = vmatpush.msra.mxu0 0.0
    %163 = vmatpush.msra.mxu0 0.0
    %164 = vmatpush.msra.mxu0 0.0
    %165 = vmatpush.msra.mxu0 %v149
    %166 = vmatpush.msra.mxu0 %v148
    %167 = vmatpush.msra.mxu0 %v147
    %168 = vmatpush.msra.mxu0 %v146
    %169 = vmatpush.msra.mxu0 %v145
    %170 = vmatpush.msra.mxu0 %v144
    %171 = vmatpush.msra.mxu0 %v143
    %172 = vmatpush.msra.mxu0 %v142
    %173 = vmatmul.f32.gmra.mxu0 %v155
    %v174 = vpop.f32.mrf.mxu0
    %v175 = vadd.f32 %v152, %v174
    %176 = vdwg.mxu0
    %vm177 = vcmask 64512
    %178 = vst.msk [vmem:[#allocation5] sm:$0xff] %vm177, %v175
    // Predicated region
    $region34: #{tpu_custom_call.1} parent=1 // pred_check
      _
    $region35: #{tpu_custom_call.1} parent=1 // pred_check_branch
      %180 = sbr.rel (0) target = $region37
    $region36: #{tpu_custom_call.1} parent=1 // pred_region
      %182 = vsyncadd [#allocation4], 0
      %s184 = sshll.u32 [#allocation5], 4
      %s185 = int_to_ptr.vmem [resolvable:$true] %s184
      %s186 = sshll.u32 %s7, 4
      %s187 = int_to_ptr.hbm [resolvable:$true] %s186
      %189 = dma.vmem_to_hbm [thread:$0]  %s185, 128, %s187, [#allocation4]
    $region37: #{tpu_custom_call.1} parent=1 // pred_fallthru
      _
    // Predicated region
    $region38: #{tpu_custom_call.1} parent=1 // pred_check
      _
    $region39: #{tpu_custom_call.1} parent=1 // pred_check_branch
      %191 = sbr.rel (0) target = $region41
    $region40: #{tpu_custom_call.1} parent=1 // pred_region
      %193 = dma.done [#allocation4], 128
    $region41: #{tpu_custom_call.1} parent=1 // pred_fallthru
      _
    %194 = vsyncpa [#allocation3], 1
    %195 = vsyncpa [#allocation4], 1

</llo_original>
